<compile_context>
chip_gen: v5e
topology: v5e:2x2
jax: 0.10.0
libtpu: 0.0.40
codegen_flags: <defaults>
</compile_context>

<pallas_src>
import functools
import math

import jax
import jax.numpy as jnp
from jax.experimental import pallas as pl
from jax.experimental.pallas import tpu as pltpu


def set2vec_kernel(x_ref, wall_ref, ball_ref, w1_ref, w2_ref, out_ref, *, num_steps):
    """Full Set2Vec forward, whole-array in VMEM, no grid.

    x_ref    : (N, D)    input set
    wall_ref : (2D, 4D)  fused gate weights, columns = [forget|input|output|2*memory]
    ball_ref : (1, 4D)   fused gate biases (same column order, memory cols scaled by 2)
    w1_ref   : (D, D)    attention projection W_1
    w2_ref   : (1, D)    attention vector W_2 stored as a row
    out_ref  : (1, 2D)   final hidden = [h | read]
    """
    D = x_ref.shape[1]

    x = x_ref[...]
    wall = wall_ref[...]                    # (2D, 4D)
    ball = ball_ref[...]                    # (1, 4D)
    w1 = w1_ref[...]                        # (D, D)
    w2 = w2_ref[...]                        # (1, D)

    hr = jnp.zeros((1, 2 * D), jnp.float32)  # [h | read], lane-dense carried state
    mem = jnp.zeros((1, D), jnp.float32)

    # num_steps is a compile-time constant -> fully unroll the recurrence.
    for _ in range(num_steps):
        # ---- fused LSTM gates: one matmul, one EUP pass for all four gates ----
        pre = jnp.dot(hr, wall, preferred_element_type=jnp.float32) + ball  # (1, 4D)
        s = jax.nn.sigmoid(pre)                                             # single EUP dispatch
        ft = s[:, 0:D]
        it = s[:, D:2 * D]
        ot = s[:, 2 * D:3 * D]
        ct = 2.0 * s[:, 3 * D:4 * D] - 1.0   # tanh(z) = 2*sigmoid(2z) - 1 (cols pre-scaled by 2)

        mem = ft * mem + it * ct
        h = ot * jnp.tanh(mem)                                              # (1, D)

        # ---- attention over the set ----
        proj = jnp.dot(h, w1, preferred_element_type=jnp.float32)           # (1, D)
        t_mat = jnp.tanh(proj + x)                                          # (N, D)
        energy = jnp.sum(t_mat * w2, axis=1, keepdims=True)                 # (N, 1) == t_mat @ W_2
        e_max = jnp.max(energy, axis=0, keepdims=True)                      # stability (matches ref)
        p = jnp.exp(energy - e_max)                                         # (N, 1)
        # Normalize AFTER the readout reduce so the EUP reciprocal overlaps the
        # VPU multiply + XLU sublane reduce.
        inv_sum = pl.reciprocal(jnp.sum(p, axis=0, keepdims=True), approx=True)
        r = jnp.sum(x * p, axis=0, keepdims=True) * inv_sum                 # (1, D)

        hr = jnp.concatenate([h, r], axis=1)                                # (1, 2D)

    out_ref[...] = hr                                                       # lane-dense row write


def set2vec(input_set, wg, bg, w1, w2_row, num_step_encoder):
    """wg: (4, 2D, D) per-gate transposed weights [f, i, o, c]; bg: (4, 1, D)."""
    N, D = input_set.shape
    # Pack the four gates lane-dense: (2D, 4D) / (1, 4D).  Memory-gate columns
    # scaled by 2 so the kernel can recover tanh from a single full-vreg sigmoid.
    wall = jnp.concatenate([wg[0], wg[1], wg[2], 2.0 * wg[3]], axis=1)
    ball = jnp.concatenate([bg[0], bg[1], bg[2], 2.0 * bg[3]], axis=1)

    kernel = functools.partial(set2vec_kernel, num_steps=num_step_encoder)
    return pl.pallas_call(
        kernel,
        out_shape=jax.ShapeDtypeStruct((1, 2 * D), jnp.float32),
        in_specs=[pl.BlockSpec(memory_space=pltpu.MemorySpace.VMEM)] * 5,
        out_specs=pl.BlockSpec(memory_space=pltpu.MemorySpace.VMEM),
    )(input_set, wall, ball, w1, w2_row)


# ------------------------- pure-JAX reference -------------------------
def set2vec_ref(input_set, wg, bg, w1, w2_row, num_step_encoder):
    N, D = input_set.shape
    hidden = jnp.zeros((1, 2 * D), jnp.float32)
    memory = jnp.zeros((1, D), jnp.float32)
    w2 = w2_row.reshape(D, 1)
    for _ in range(num_step_encoder):
        ft = jax.nn.sigmoid(hidden @ wg[0] + bg[0])
        it = jax.nn.sigmoid(hidden @ wg[1] + bg[1])
        ot = jax.nn.sigmoid(hidden @ wg[2] + bg[2])
        ct = jnp.tanh(hidden @ wg[3] + bg[3])
        memory = ft * memory + it * ct
        h = ot * jnp.tanh(memory)
        energy = jnp.tanh(h @ w1 + input_set) @ w2
        att = jax.nn.softmax(energy, axis=0)
        read = jnp.sum(input_set * att, axis=0, keepdims=True)
        hidden = jnp.concatenate([h, read], axis=1)
    return hidden


def xavier_uniform(key, shape, fan_in, fan_out):
    bound = math.sqrt(6.0 / (fan_in + fan_out))
    return jax.random.uniform(key, shape, jnp.float32, -bound, bound)


if __name__ == "__main__":
    N = 8                 # number of set elements
    D = 32                # element_dim  (4D = 128 -> one lane-dense vreg)
    NUM_STEPS = 4         # num_step_encoder

    key = jax.random.PRNGKey(0)
    k_x, k_wg, k_w1, k_w2 = jax.random.split(key, 4)

    input_set = jax.random.normal(k_x, (N, D), jnp.float32)

    # Gate weights: torch nn.Linear(2D, D) has weight (D, 2D); we store the
    # transpose (2D, D) so the gate is hidden @ W + b.  Biases are zero
    # (as in Set2SetLSTM._init_param).
    gate_keys = jax.random.split(k_wg, 4)
    wg = jnp.stack(
        [xavier_uniform(gk, (2 * D, D), fan_in=2 * D, fan_out=D) for gk in gate_keys],
        axis=0,
    )                                               # (4, 2D, D)
    bg = jnp.zeros((4, 1, D), jnp.float32)          # (4, 1, D)

    w1 = xavier_uniform(k_w1, (D, D), fan_in=D, fan_out=D)          # (D, D)
    w2_row = xavier_uniform(k_w2, (1, D), fan_in=D, fan_out=1)      # W_2 as a row

    out = set2vec(input_set, wg, bg, w1, w2_row, NUM_STEPS)
    out = jax.block_until_ready(out)

    ref = set2vec_ref(input_set, wg, bg, w1, w2_row, NUM_STEPS)
    assert out.shape == (1, 2 * D)
    # Tolerance absorbs the approx (EUP) reciprocal in the softmax denominator.
    assert jnp.allclose(out, ref, atol=1e-2, rtol=1e-2)

    print("KERNEL_OK")
</pallas_src>

<mosaic_0001>
module attributes {stable_mosaic.version = 11 : i64} {
  func.func @set2vec_kernel(%arg0: memref<8x32xf32, #tpu.memory_space<vmem>>, %arg1: memref<64x128xf32, #tpu.memory_space<vmem>>, %arg2: memref<1x128xf32, #tpu.memory_space<vmem>>, %arg3: memref<32x32xf32, #tpu.memory_space<vmem>>, %arg4: memref<1x32xf32, #tpu.memory_space<vmem>>, %arg5: memref<1x64xf32, #tpu.memory_space<vmem>>) attributes {dimension_semantics = [], scalar_prefetch = 0 : i64, scratch_operands = 0 : i64, tpu.core_type = #tpu.core_type<tc>} {
    %c0 = arith.constant 0 : index
    %c0_0 = arith.constant 0 : index
    %0 = vector.load %arg0[%c0, %c0_0] : memref<8x32xf32, #tpu.memory_space<vmem>>, vector<8x32xf32>
    %c0_1 = arith.constant 0 : index
    %c0_2 = arith.constant 0 : index
    %1 = vector.load %arg1[%c0_1, %c0_2] : memref<64x128xf32, #tpu.memory_space<vmem>>, vector<64x128xf32>
    %c0_3 = arith.constant 0 : index
    %c0_4 = arith.constant 0 : index
    %2 = vector.load %arg2[%c0_3, %c0_4] : memref<1x128xf32, #tpu.memory_space<vmem>>, vector<1x128xf32>
    %c0_5 = arith.constant 0 : index
    %c0_6 = arith.constant 0 : index
    %3 = vector.load %arg3[%c0_5, %c0_6] : memref<32x32xf32, #tpu.memory_space<vmem>>, vector<32x32xf32>
    %c0_7 = arith.constant 0 : index
    %c0_8 = arith.constant 0 : index
    %4 = vector.load %arg4[%c0_7, %c0_8] : memref<1x32xf32, #tpu.memory_space<vmem>>, vector<1x32xf32>
    %cst = arith.constant 0.000000e+00 : f32
    %5 = vector.broadcast %cst : f32 to vector<1x64xf32>
    %cst_9 = arith.constant 0.000000e+00 : f32
    %6 = vector.broadcast %cst_9 : f32 to vector<1x32xf32>
    %cst_10 = arith.constant dense<0.000000e+00> : vector<1x128xf32>
    %7 = tpu.matmul %5, %1, %cst_10 {dimension_numbers = #tpu.dot_dimension_numbers<[1], [0], [0], [1], [0, 0, 1, 1], [], []>} : vector<1x64xf32>, vector<64x128xf32>, vector<1x128xf32> -> vector<1x128xf32>
    %8 = arith.addf %7, %2 : vector<1x128xf32>
    %9 = arith.negf %8 : vector<1x128xf32>
    %10 = math.exp %9 : vector<1x128xf32>
    %cst_11 = arith.constant 1.000000e+00 : f32
    %11 = vector.broadcast %cst_11 : f32 to vector<1x128xf32>
    %12 = arith.addf %11, %10 : vector<1x128xf32>
    %13 = arith.divf %11, %12 : vector<1x128xf32>
    %14 = vector.extract_strided_slice %13 {offsets = [0, 0], sizes = [1, 32], strides = [1, 1]} : vector<1x128xf32> to vector<1x32xf32>
    %15 = vector.extract_strided_slice %13 {offsets = [0, 32], sizes = [1, 32], strides = [1, 1]} : vector<1x128xf32> to vector<1x32xf32>
    %16 = vector.extract_strided_slice %13 {offsets = [0, 64], sizes = [1, 32], strides = [1, 1]} : vector<1x128xf32> to vector<1x32xf32>
    %17 = vector.extract_strided_slice %13 {offsets = [0, 96], sizes = [1, 32], strides = [1, 1]} : vector<1x128xf32> to vector<1x32xf32>
    %cst_12 = arith.constant 2.000000e+00 : f32
    %18 = vector.broadcast %cst_12 : f32 to vector<1x32xf32>
    %19 = arith.mulf %18, %17 : vector<1x32xf32>
    %cst_13 = arith.constant 1.000000e+00 : f32
    %20 = vector.broadcast %cst_13 : f32 to vector<1x32xf32>
    %21 = arith.subf %19, %20 : vector<1x32xf32>
    %22 = arith.mulf %14, %6 : vector<1x32xf32>
    %23 = arith.mulf %15, %21 : vector<1x32xf32>
    %24 = arith.addf %22, %23 : vector<1x32xf32>
    %25 = math.tanh %24 : vector<1x32xf32>
    %26 = arith.mulf %16, %25 : vector<1x32xf32>
    %cst_14 = arith.constant dense<0.000000e+00> : vector<1x32xf32>
    %27 = tpu.matmul %26, %3, %cst_14 {dimension_numbers = #tpu.dot_dimension_numbers<[1], [0], [0], [1], [0, 0, 1, 1], [], []>} : vector<1x32xf32>, vector<32x32xf32>, vector<1x32xf32> -> vector<1x32xf32>
    %28 = vector.broadcast %27 : vector<1x32xf32> to vector<8x32xf32>
    %29 = arith.addf %28, %0 : vector<8x32xf32>
    %30 = math.tanh %29 : vector<8x32xf32>
    %31 = vector.broadcast %4 : vector<1x32xf32> to vector<8x32xf32>
    %32 = arith.mulf %30, %31 : vector<8x32xf32>
    %cst_15 = arith.constant dense<0.000000e+00> : vector<8xf32>
    %33 = vector.multi_reduction <add>, %32, %cst_15 [1] : vector<8x32xf32> to vector<8xf32>
    %34 = vector.shape_cast %33 : vector<8xf32> to vector<8x1xf32>
    %cst_16 = arith.constant dense<0xFF800000> : vector<1xf32>
    %35 = vector.multi_reduction <maximumf>, %34, %cst_16 [0] : vector<8x1xf32> to vector<1xf32>
    %36 = vector.shape_cast %35 : vector<1xf32> to vector<1x1xf32>
    %37 = vector.broadcast %36 : vector<1x1xf32> to vector<8x1xf32>
    %38 = arith.subf %34, %37 : vector<8x1xf32>
    %39 = math.exp %38 : vector<8x1xf32>
    %cst_17 = arith.constant dense<0.000000e+00> : vector<1xf32>
    %40 = vector.multi_reduction <add>, %39, %cst_17 [0] : vector<8x1xf32> to vector<1xf32>
    %41 = vector.shape_cast %40 : vector<1xf32> to vector<1x1xf32>
    %42 = tpu.reciprocal %41 {approx = true} : vector<1x1xf32> -> vector<1x1xf32>
    %43 = vector.broadcast %39 : vector<8x1xf32> to vector<8x32xf32>
    %44 = arith.mulf %0, %43 : vector<8x32xf32>
    %cst_18 = arith.constant dense<0.000000e+00> : vector<32xf32>
    %45 = vector.multi_reduction <add>, %44, %cst_18 [0] : vector<8x32xf32> to vector<32xf32>
    %46 = vector.shape_cast %45 : vector<32xf32> to vector<1x32xf32>
    %47 = vector.broadcast %42 : vector<1x1xf32> to vector<1x32xf32>
    %48 = arith.mulf %46, %47 : vector<1x32xf32>
    %49 = tpu.concatenate %26, %48 in 1 : vector<1x32xf32>, vector<1x32xf32> -> vector<1x64xf32>
    %cst_19 = arith.constant dense<0.000000e+00> : vector<1x128xf32>
    %50 = tpu.matmul %49, %1, %cst_19 {dimension_numbers = #tpu.dot_dimension_numbers<[1], [0], [0], [1], [0, 0, 1, 1], [], []>} : vector<1x64xf32>, vector<64x128xf32>, vector<1x128xf32> -> vector<1x128xf32>
    %51 = arith.addf %50, %2 : vector<1x128xf32>
    %52 = arith.negf %51 : vector<1x128xf32>
    %53 = math.exp %52 : vector<1x128xf32>
    %cst_20 = arith.constant 1.000000e+00 : f32
    %54 = vector.broadcast %cst_20 : f32 to vector<1x128xf32>
    %55 = arith.addf %54, %53 : vector<1x128xf32>
    %56 = arith.divf %54, %55 : vector<1x128xf32>
    %57 = vector.extract_strided_slice %56 {offsets = [0, 0], sizes = [1, 32], strides = [1, 1]} : vector<1x128xf32> to vector<1x32xf32>
    %58 = vector.extract_strided_slice %56 {offsets = [0, 32], sizes = [1, 32], strides = [1, 1]} : vector<1x128xf32> to vector<1x32xf32>
    %59 = vector.extract_strided_slice %56 {offsets = [0, 64], sizes = [1, 32], strides = [1, 1]} : vector<1x128xf32> to vector<1x32xf32>
    %60 = vector.extract_strided_slice %56 {offsets = [0, 96], sizes = [1, 32], strides = [1, 1]} : vector<1x128xf32> to vector<1x32xf32>
    %cst_21 = arith.constant 2.000000e+00 : f32
    %61 = vector.broadcast %cst_21 : f32 to vector<1x32xf32>
    %62 = arith.mulf %61, %60 : vector<1x32xf32>
    %cst_22 = arith.constant 1.000000e+00 : f32
    %63 = vector.broadcast %cst_22 : f32 to vector<1x32xf32>
    %64 = arith.subf %62, %63 : vector<1x32xf32>
    %65 = arith.mulf %57, %24 : vector<1x32xf32>
    %66 = arith.mulf %58, %64 : vector<1x32xf32>
    %67 = arith.addf %65, %66 : vector<1x32xf32>
    %68 = math.tanh %67 : vector<1x32xf32>
    %69 = arith.mulf %59, %68 : vector<1x32xf32>
    %cst_23 = arith.constant dense<0.000000e+00> : vector<1x32xf32>
    %70 = tpu.matmul %69, %3, %cst_23 {dimension_numbers = #tpu.dot_dimension_numbers<[1], [0], [0], [1], [0, 0, 1, 1], [], []>} : vector<1x32xf32>, vector<32x32xf32>, vector<1x32xf32> -> vector<1x32xf32>
    %71 = vector.broadcast %70 : vector<1x32xf32> to vector<8x32xf32>
    %72 = arith.addf %71, %0 : vector<8x32xf32>
    %73 = math.tanh %72 : vector<8x32xf32>
    %74 = vector.broadcast %4 : vector<1x32xf32> to vector<8x32xf32>
    %75 = arith.mulf %73, %74 : vector<8x32xf32>
    %cst_24 = arith.constant dense<0.000000e+00> : vector<8xf32>
    %76 = vector.multi_reduction <add>, %75, %cst_24 [1] : vector<8x32xf32> to vector<8xf32>
    %77 = vector.shape_cast %76 : vector<8xf32> to vector<8x1xf32>
    %cst_25 = arith.constant dense<0xFF800000> : vector<1xf32>
    %78 = vector.multi_reduction <maximumf>, %77, %cst_25 [0] : vector<8x1xf32> to vector<1xf32>
    %79 = vector.shape_cast %78 : vector<1xf32> to vector<1x1xf32>
    %80 = vector.broadcast %79 : vector<1x1xf32> to vector<8x1xf32>
    %81 = arith.subf %77, %80 : vector<8x1xf32>
    %82 = math.exp %81 : vector<8x1xf32>
    %cst_26 = arith.constant dense<0.000000e+00> : vector<1xf32>
    %83 = vector.multi_reduction <add>, %82, %cst_26 [0] : vector<8x1xf32> to vector<1xf32>
    %84 = vector.shape_cast %83 : vector<1xf32> to vector<1x1xf32>
    %85 = tpu.reciprocal %84 {approx = true} : vector<1x1xf32> -> vector<1x1xf32>
    %86 = vector.broadcast %82 : vector<8x1xf32> to vector<8x32xf32>
    %87 = arith.mulf %0, %86 : vector<8x32xf32>
    %cst_27 = arith.constant dense<0.000000e+00> : vector<32xf32>
    %88 = vector.multi_reduction <add>, %87, %cst_27 [0] : vector<8x32xf32> to vector<32xf32>
    %89 = vector.shape_cast %88 : vector<32xf32> to vector<1x32xf32>
    %90 = vector.broadcast %85 : vector<1x1xf32> to vector<1x32xf32>
    %91 = arith.mulf %89, %90 : vector<1x32xf32>
    %92 = tpu.concatenate %69, %91 in 1 : vector<1x32xf32>, vector<1x32xf32> -> vector<1x64xf32>
    %cst_28 = arith.constant dense<0.000000e+00> : vector<1x128xf32>
    %93 = tpu.matmul %92, %1, %cst_28 {dimension_numbers = #tpu.dot_dimension_numbers<[1], [0], [0], [1], [0, 0, 1, 1], [], []>} : vector<1x64xf32>, vector<64x128xf32>, vector<1x128xf32> -> vector<1x128xf32>
    %94 = arith.addf %93, %2 : vector<1x128xf32>
    %95 = arith.negf %94 : vector<1x128xf32>
    %96 = math.exp %95 : vector<1x128xf32>
    %cst_29 = arith.constant 1.000000e+00 : f32
    %97 = vector.broadcast %cst_29 : f32 to vector<1x128xf32>
    %98 = arith.addf %97, %96 : vector<1x128xf32>
    %99 = arith.divf %97, %98 : vector<1x128xf32>
    %100 = vector.extract_strided_slice %99 {offsets = [0, 0], sizes = [1, 32], strides = [1, 1]} : vector<1x128xf32> to vector<1x32xf32>
    %101 = vector.extract_strided_slice %99 {offsets = [0, 32], sizes = [1, 32], strides = [1, 1]} : vector<1x128xf32> to vector<1x32xf32>
    %102 = vector.extract_strided_slice %99 {offsets = [0, 64], sizes = [1, 32], strides = [1, 1]} : vector<1x128xf32> to vector<1x32xf32>
    %103 = vector.extract_strided_slice %99 {offsets = [0, 96], sizes = [1, 32], strides = [1, 1]} : vector<1x128xf32> to vector<1x32xf32>
    %cst_30 = arith.constant 2.000000e+00 : f32
    %104 = vector.broadcast %cst_30 : f32 to vector<1x32xf32>
    %105 = arith.mulf %104, %103 : vector<1x32xf32>
    %cst_31 = arith.constant 1.000000e+00 : f32
    %106 = vector.broadcast %cst_31 : f32 to vector<1x32xf32>
    %107 = arith.subf %105, %106 : vector<1x32xf32>
    %108 = arith.mulf %100, %67 : vector<1x32xf32>
    %109 = arith.mulf %101, %107 : vector<1x32xf32>
    %110 = arith.addf %108, %109 : vector<1x32xf32>
    %111 = math.tanh %110 : vector<1x32xf32>
    %112 = arith.mulf %102, %111 : vector<1x32xf32>
    %cst_32 = arith.constant dense<0.000000e+00> : vector<1x32xf32>
    %113 = tpu.matmul %112, %3, %cst_32 {dimension_numbers = #tpu.dot_dimension_numbers<[1], [0], [0], [1], [0, 0, 1, 1], [], []>} : vector<1x32xf32>, vector<32x32xf32>, vector<1x32xf32> -> vector<1x32xf32>
    %114 = vector.broadcast %113 : vector<1x32xf32> to vector<8x32xf32>
    %115 = arith.addf %114, %0 : vector<8x32xf32>
    %116 = math.tanh %115 : vector<8x32xf32>
    %117 = vector.broadcast %4 : vector<1x32xf32> to vector<8x32xf32>
    %118 = arith.mulf %116, %117 : vector<8x32xf32>
    %cst_33 = arith.constant dense<0.000000e+00> : vector<8xf32>
    %119 = vector.multi_reduction <add>, %118, %cst_33 [1] : vector<8x32xf32> to vector<8xf32>
    %120 = vector.shape_cast %119 : vector<8xf32> to vector<8x1xf32>
    %cst_34 = arith.constant dense<0xFF800000> : vector<1xf32>
    %121 = vector.multi_reduction <maximumf>, %120, %cst_34 [0] : vector<8x1xf32> to vector<1xf32>
    %122 = vector.shape_cast %121 : vector<1xf32> to vector<1x1xf32>
    %123 = vector.broadcast %122 : vector<1x1xf32> to vector<8x1xf32>
    %124 = arith.subf %120, %123 : vector<8x1xf32>
    %125 = math.exp %124 : vector<8x1xf32>
    %cst_35 = arith.constant dense<0.000000e+00> : vector<1xf32>
    %126 = vector.multi_reduction <add>, %125, %cst_35 [0] : vector<8x1xf32> to vector<1xf32>
    %127 = vector.shape_cast %126 : vector<1xf32> to vector<1x1xf32>
    %128 = tpu.reciprocal %127 {approx = true} : vector<1x1xf32> -> vector<1x1xf32>
    %129 = vector.broadcast %125 : vector<8x1xf32> to vector<8x32xf32>
    %130 = arith.mulf %0, %129 : vector<8x32xf32>
    %cst_36 = arith.constant dense<0.000000e+00> : vector<32xf32>
    %131 = vector.multi_reduction <add>, %130, %cst_36 [0] : vector<8x32xf32> to vector<32xf32>
    %132 = vector.shape_cast %131 : vector<32xf32> to vector<1x32xf32>
    %133 = vector.broadcast %128 : vector<1x1xf32> to vector<1x32xf32>
    %134 = arith.mulf %132, %133 : vector<1x32xf32>
    %135 = tpu.concatenate %112, %134 in 1 : vector<1x32xf32>, vector<1x32xf32> -> vector<1x64xf32>
    %cst_37 = arith.constant dense<0.000000e+00> : vector<1x128xf32>
    %136 = tpu.matmul %135, %1, %cst_37 {dimension_numbers = #tpu.dot_dimension_numbers<[1], [0], [0], [1], [0, 0, 1, 1], [], []>} : vector<1x64xf32>, vector<64x128xf32>, vector<1x128xf32> -> vector<1x128xf32>
    %137 = arith.addf %136, %2 : vector<1x128xf32>
    %138 = arith.negf %137 : vector<1x128xf32>
    %139 = math.exp %138 : vector<1x128xf32>
    %cst_38 = arith.constant 1.000000e+00 : f32
    %140 = vector.broadcast %cst_38 : f32 to vector<1x128xf32>
    %141 = arith.addf %140, %139 : vector<1x128xf32>
    %142 = arith.divf %140, %141 : vector<1x128xf32>
    %143 = vector.extract_strided_slice %142 {offsets = [0, 0], sizes = [1, 32], strides = [1, 1]} : vector<1x128xf32> to vector<1x32xf32>
    %144 = vector.extract_strided_slice %142 {offsets = [0, 32], sizes = [1, 32], strides = [1, 1]} : vector<1x128xf32> to vector<1x32xf32>
    %145 = vector.extract_strided_slice %142 {offsets = [0, 64], sizes = [1, 32], strides = [1, 1]} : vector<1x128xf32> to vector<1x32xf32>
    %146 = vector.extract_strided_slice %142 {offsets = [0, 96], sizes = [1, 32], strides = [1, 1]} : vector<1x128xf32> to vector<1x32xf32>
    %cst_39 = arith.constant 2.000000e+00 : f32
    %147 = vector.broadcast %cst_39 : f32 to vector<1x32xf32>
    %148 = arith.mulf %147, %146 : vector<1x32xf32>
    %cst_40 = arith.constant 1.000000e+00 : f32
    %149 = vector.broadcast %cst_40 : f32 to vector<1x32xf32>
    %150 = arith.subf %148, %149 : vector<1x32xf32>
    %151 = arith.mulf %143, %110 : vector<1x32xf32>
    %152 = arith.mulf %144, %150 : vector<1x32xf32>
    %153 = arith.addf %151, %152 : vector<1x32xf32>
    %154 = math.tanh %153 : vector<1x32xf32>
    %155 = arith.mulf %145, %154 : vector<1x32xf32>
    %cst_41 = arith.constant dense<0.000000e+00> : vector<1x32xf32>
    %156 = tpu.matmul %155, %3, %cst_41 {dimension_numbers = #tpu.dot_dimension_numbers<[1], [0], [0], [1], [0, 0, 1, 1], [], []>} : vector<1x32xf32>, vector<32x32xf32>, vector<1x32xf32> -> vector<1x32xf32>
    %157 = vector.broadcast %156 : vector<1x32xf32> to vector<8x32xf32>
    %158 = arith.addf %157, %0 : vector<8x32xf32>
    %159 = math.tanh %158 : vector<8x32xf32>
    %160 = vector.broadcast %4 : vector<1x32xf32> to vector<8x32xf32>
    %161 = arith.mulf %159, %160 : vector<8x32xf32>
    %cst_42 = arith.constant dense<0.000000e+00> : vector<8xf32>
    %162 = vector.multi_reduction <add>, %161, %cst_42 [1] : vector<8x32xf32> to vector<8xf32>
    %163 = vector.shape_cast %162 : vector<8xf32> to vector<8x1xf32>
    %cst_43 = arith.constant dense<0xFF800000> : vector<1xf32>
    %164 = vector.multi_reduction <maximumf>, %163, %cst_43 [0] : vector<8x1xf32> to vector<1xf32>
    %165 = vector.shape_cast %164 : vector<1xf32> to vector<1x1xf32>
    %166 = vector.broadcast %165 : vector<1x1xf32> to vector<8x1xf32>
    %167 = arith.subf %163, %166 : vector<8x1xf32>
    %168 = math.exp %167 : vector<8x1xf32>
    %cst_44 = arith.constant dense<0.000000e+00> : vector<1xf32>
    %169 = vector.multi_reduction <add>, %168, %cst_44 [0] : vector<8x1xf32> to vector<1xf32>
    %170 = vector.shape_cast %169 : vector<1xf32> to vector<1x1xf32>
    %171 = tpu.reciprocal %170 {approx = true} : vector<1x1xf32> -> vector<1x1xf32>
    %172 = vector.broadcast %168 : vector<8x1xf32> to vector<8x32xf32>
    %173 = arith.mulf %0, %172 : vector<8x32xf32>
    %cst_45 = arith.constant dense<0.000000e+00> : vector<32xf32>
    %174 = vector.multi_reduction <add>, %173, %cst_45 [0] : vector<8x32xf32> to vector<32xf32>
    %175 = vector.shape_cast %174 : vector<32xf32> to vector<1x32xf32>
    %176 = vector.broadcast %171 : vector<1x1xf32> to vector<1x32xf32>
    %177 = arith.mulf %175, %176 : vector<1x32xf32>
    %178 = tpu.concatenate %155, %177 in 1 : vector<1x32xf32>, vector<1x32xf32> -> vector<1x64xf32>
    %c0_46 = arith.constant 0 : index
    %c0_47 = arith.constant 0 : index
    %179 = vector.load %arg5[%c0_46, %c0_47] : memref<1x64xf32, #tpu.memory_space<vmem>>, vector<1x64xf32>
    tpu.vector_store %arg5[%c0_46, %c0_47], %178 {strides = array<i32>} : memref<1x64xf32, #tpu.memory_space<vmem>>, vector<1x64xf32>,
    return
  }
}

</mosaic_0001>

<llo_original>
// kernel: tpu_custom_call.1
$region0: #{tpu_custom_call.1}
  #allocation0 [shape = 'u32[]', space=smem, size = 0x4, offset = 0x4, fixed_abs, tag = 'smem constant byte address 0x4 - core index']
  #allocation1 [shape = 'u32[72,128]{1,0:T(1,128)}', space=vmem, size = 0x9000, scoped, tag = 'internal scratch']
  %s0 = inlined_call_operand.hbm [shape: f32[8,32], index: 0, kind: input, shape index: {}]
  %s1 = inlined_call_operand.hbm [shape: f32[64,128], index: 1, kind: input, shape index: {}]
  %s2 = inlined_call_operand.vmem [shape: f32[1,128], index: 2, kind: input, shape index: {}]
  %s3 = inlined_call_operand.hbm [shape: f32[32,32], index: 3, kind: input, shape index: {}]
  %s4 = inlined_call_operand.vmem [shape: f32[1,32], index: 4, kind: input, shape index: {}]
  %s5 = inlined_call_operand.hbm [shape: f32[1,64], index: 5, kind: output, shape index: {}]
  %s6 = sld [smem:[#allocation0]]
  $region42: #{tpu_custom_call.1} parent=0
    _
  %s8 = ssub.s32 1, %s6
  %s9 = scalar_select 0, %s8, %s6
  $region1: #{tpu_custom_call.1} parent=0
    #allocation2 [shape = 'u8[4096]{0}', space=vmem, size = 0x1000, scoped, tag = 'input window, operand 0, single buffered']
    #allocation3 [shape = 's32[1]{0}', space=sflag, size = 0x4, scoped, tag = 'scoped memory for tpu_custom_call.1']
    #allocation4 [shape = 's32[1]{0}', space=sflag, size = 0x4, scoped, tag = 'scoped memory for tpu_custom_call.1']
    #allocation5 [shape = 'u8[32768]{0}', space=vmem, size = 0x8000, scoped, tag = 'input window, operand 1, single buffered']
    #allocation6 [shape = 's32[1]{0}', space=sflag, size = 0x4, scoped, tag = 'scoped memory for tpu_custom_call.1']
    #allocation7 [shape = 'u8[16384]{0}', space=vmem, size = 0x4000, scoped, tag = 'input window, operand 3, single buffered']
    #allocation8 [shape = 'u8[512]{0}', space=vmem, size = 0x400, scoped, tag = 'output window, operand 0, single buffered']
    %10 = vsyncpa [#allocation3], 0
    %11 = vsyncpa [#allocation6], 0
    %12 = vsyncpa [#allocation4], 0
    // Predicated region
    $region2: #{tpu_custom_call.1} parent=1 // pred_check
      _
    $region3: #{tpu_custom_call.1} parent=1 // pred_check_branch
      %14 = sbr.rel (0) target = $region5
    $region4: #{tpu_custom_call.1} parent=1 // pred_region
      %16 = vsyncadd [#allocation3], 0
      %s18 = sshll.u32 %s0, 4
      %s19 = int_to_ptr.hbm [resolvable:$true] %s18
      %s20 = sshll.u32 [#allocation2], 4
      %s21 = int_to_ptr.vmem [resolvable:$true] %s20
      %23 = dma.hbm_to_vmem [thread:$0]  %s19, 128, %s21, [#allocation3]
    $region5: #{tpu_custom_call.1} parent=1 // pred_fallthru
      _
    // Predicated region
    $region6: #{tpu_custom_call.1} parent=1 // pred_check
      _
    $region7: #{tpu_custom_call.1} parent=1 // pred_check_branch
      %25 = sbr.rel (0) target = $region9
    $region8: #{tpu_custom_call.1} parent=1 // pred_region
      %27 = vsyncadd [#allocation6], 0
      %s28 = sshll.u32 %s1, 4
      %s29 = int_to_ptr.hbm [resolvable:$true] %s28
      %s30 = sshll.u32 [#allocation5], 4
      %s31 = int_to_ptr.vmem [resolvable:$true] %s30
      %36 = dma.hbm_to_vmem [thread:$0]  %s29, 1024, %s31, [#allocation6], 128, 128, 8
    $region9: #{tpu_custom_call.1} parent=1 // pred_fallthru
      _
    // Predicated region
    $region10: #{tpu_custom_call.1} parent=1 // pred_check
      _
    $region11: #{tpu_custom_call.1} parent=1 // pred_check_branch
      %38 = sbr.rel (0) target = $region13
    $region12: #{tpu_custom_call.1} parent=1 // pred_region
      _
    $region13: #{tpu_custom_call.1} parent=1 // pred_fallthru
      _
    // Predicated region
    $region14: #{tpu_custom_call.1} parent=1 // pred_check
      _
    $region15: #{tpu_custom_call.1} parent=1 // pred_check_branch
      %40 = sbr.rel (0) target = $region17
    $region16: #{tpu_custom_call.1} parent=1 // pred_region
      %42 = vsyncadd [#allocation6], 0
      %s43 = sshll.u32 %s3, 4
      %s44 = int_to_ptr.hbm [resolvable:$true] %s43
      %s45 = sshll.u32 [#allocation7], 4
      %s46 = int_to_ptr.vmem [resolvable:$true] %s45
      %51 = dma.hbm_to_vmem [thread:$0]  %s44, 512, %s46, [#allocation6], 128, 128, 8
    $region17: #{tpu_custom_call.1} parent=1 // pred_fallthru
      _
    // Predicated region
    $region18: #{tpu_custom_call.1} parent=1 // pred_check
      _
    $region19: #{tpu_custom_call.1} parent=1 // pred_check_branch
      %53 = sbr.rel (0) target = $region21
    $region20: #{tpu_custom_call.1} parent=1 // pred_region
      _
    $region21: #{tpu_custom_call.1} parent=1 // pred_fallthru
      _
    // Predicated region
    $region22: #{tpu_custom_call.1} parent=1 // pred_check
      _
    $region23: #{tpu_custom_call.1} parent=1 // pred_check_branch
      %55 = sbr.rel (0) target = $region25
    $region24: #{tpu_custom_call.1} parent=1 // pred_region
      %57 = dma.done [#allocation3], 128
    $region25: #{tpu_custom_call.1} parent=1 // pred_fallthru
      _
    // Predicated region
    $region26: #{tpu_custom_call.1} parent=1 // pred_check
      _
    $region27: #{tpu_custom_call.1} parent=1 // pred_check_branch
      %59 = sbr.rel (0) target = $region29
    $region28: #{tpu_custom_call.1} parent=1 // pred_region
      %61 = dma.done [#allocation6], 1024
    $region29: #{tpu_custom_call.1} parent=1 // pred_fallthru
      _
    // Predicated region
    $region30: #{tpu_custom_call.1} parent=1 // pred_check
      _
    $region31: #{tpu_custom_call.1} parent=1 // pred_check_branch
      %63 = sbr.rel (0) target = $region33
    $region32: #{tpu_custom_call.1} parent=1 // pred_region
      %65 = dma.done [#allocation6], 512
    $region33: #{tpu_custom_call.1} parent=1 // pred_fallthru
      _
    %v66 = vld [vmem:[#allocation2] sm:$0xff]
    %v67 = vld [vmem:[#allocation5] sm:$0xff]
    %v68 = vld [vmem:[#allocation5 + $0x8] sm:$0xff]
    %v69 = vld [vmem:[#allocation5 + $0x10] sm:$0xff]
    %v70 = vld [vmem:[#allocation5 + $0x18] sm:$0xff]
    %v71 = vld [vmem:[#allocation5 + $0x20] sm:$0xff]
    %v72 = vld [vmem:[#allocation5 + $0x28] sm:$0xff]
    %v73 = vld [vmem:[#allocation5 + $0x30] sm:$0xff]
    %v74 = vld [vmem:[#allocation5 + $0x38] sm:$0xff]
    %v75 = vld [vmem:[%s2] sm:$0x1]
    %v76 = vld [vmem:[#allocation7] sm:$0xff]
    %v77 = vld [vmem:[#allocation7 + $0x8] sm:$0xff]
    %v78 = vld [vmem:[#allocation7 + $0x10] sm:$0xff]
    %v79 = vld [vmem:[#allocation7 + $0x18] sm:$0xff]
    %v80 = vld [vmem:[%s4] sm:$0x1]
    %vm81 = vcmask 523264
    %v83 = vsel %vm81, 0.0, 0
    %85 = vmatpush.msra.mxu0 0.0
    %86 = vmatpush.msra.mxu0 0.0
    %87 = vmatpush.msra.mxu0 0.0
    %88 = vmatpush.msra.mxu0 0.0
    %89 = vmatpush.msra.mxu0 0.0
    %90 = vmatpush.msra.mxu0 0.0
    %91 = vmatpush.msra.mxu0 0.0
    %92 = vmatpush.msra.mxu0 0.0
    %93 = vmatpush.msra.mxu0 %v74
    %94 = vmatpush.msra.mxu0 %v73
    %95 = vmatpush.msra.mxu0 %v72
    %96 = vmatpush.msra.mxu0 %v71
    %97 = vmatpush.msra.mxu0 %v70
    %98 = vmatpush.msra.mxu0 %v69
    %99 = vmatpush.msra.mxu0 %v68
    %100 = vmatpush.msra.mxu0 %v67
    %101 = vmatmul.f32.gmra.mxu0 %v83
    %v102 = vpop.f32.mrf.mxu0
    %v103 = vadd.f32 %v75, %v102
    %104 = vdwg.mxu0
    %v105 = vxor.u32 %v103, 2147483648
    %v106 = vmul.f32 %v105, 1.442695
    %v107 = vpow.pop %v106
    %v108 = vadd.f32 %v107, 1.0
    %v109 = vrcp.pop %v108
    %v110 = vmul.f32 %v108, %v109
    %v111 = vsub.f32 1.0, %v110
    %v112 = vmul.f32 %v109, %v111
    %v113 = vadd.f32 %v109, %v112
    %vm114 = vweird.f32 %v108
    %vm115 = vweird.f32 %v109
    %vm116 = vmor %vm114, %vm115
    %v117 = vsel %vm116, %v109, %v113
    %v118 = vand.u32 2147483647, %v108
    %vm119 = vcmp.eq.f32.partialorder %v118, 8.507059e+37
    %v120 = vand.u32 %v108, 2147483648
    %v121 = vor.u32 1.1754944e-38, %v120
    %v122 = vsel %vm119, %v121, %v117
    %v123 = vmul.f32 1.0, %v122
    %v124 = vmul.f32 %v123, 2.0
    %v125 = vsub.f32 %v124, 1.0
    %v126 = vmul.f32 %v123, 0.0
    %128 = vrot.lane.b32.xlu0 %v125, 64
    %v129 = vpop.permute.xlu0 %128
    %v131 = vmul.f32 %v123, %v129
    %133 = vrot.lane.b32.xlu0 %v131, 96
    %v134 = vpop.permute.xlu0 %133
    %v136 = vadd.f32 %v126, %v134
    %v137 = vtanh.pop %v136
    %139 = vrot.lane.b32.xlu0 %v137, 64
    %v140 = vpop.permute.xlu0 %139
    %v142 = vmul.f32 %v123, %v140
    %144 = vrot.lane.b32.xlu0 %v142, 64
    %v145 = vpop.permute.xlu0 %144
    %vm146 = vcmask 261120
    %v147 = vsel %vm146, %v145, 0
    %149 = vmatpush.msra.mxu0 0.0
    %150 = vmatpush.msra.mxu0 0.0
    %151 = vmatpush.msra.mxu0 0.0
    %152 = vmatpush.msra.mxu0 0.0
    %153 = vmatpush.msra.mxu0 0.0
    %154 = vmatpush.msra.mxu0 0.0
    %155 = vmatpush.msra.mxu0 0.0
    %156 = vmatpush.msra.mxu0 0.0
    %157 = vmatpush.msra.mxu0 0.0
    %158 = vmatpush.msra.mxu0 0.0
    %159 = vmatpush.msra.mxu0 0.0
    %160 = vmatpush.msra.mxu0 0.0
    %161 = vmatpush.msra.mxu0 %v79
    %162 = vmatpush.msra.mxu0 %v78
    %163 = vmatpush.msra.mxu0 %v77
    %164 = vmatpush.msra.mxu0 %v76
    %165 = vmatmul.f32.gmra.mxu0 %v147
    %v166 = vpop.f32.mrf.mxu0
    %v167 = vadd.f32 0.0, %v166
    %168 = vdwg.mxu0
    %v169 = vperm.slane %v167, 0
    %v170 = vadd.f32 %v169, %v66
    %v171 = vtanh.pop %v170
    %v173 = vperm.slane %v80, 0
    %v175 = vmul.f32 %v171, %v173
    %v176 = vsel %vm146, %v175, 0.0
    %177 = vadd.xlane.f32.xlu0 %v176
    %v178 = vpop.xlane.xlu0 %177
    %v179 = vrot.slane %v178, 4
    %v180 = vmax.f32 %v178, %v179
    %v181 = vrot.slane %v180, 2
    %v182 = vmax.f32 %v180, %v181
    %v183 = vrot.slane %v182, 1
    %v184 = vmax.f32 %v182, %v183
    %v185 = vsub.f32 %v178, %v184
    %v186 = vmul.f32 %v185, 1.442695
    %v187 = vpow.pop %v186
    %v188 = vrot.slane %v187, 4
    %v189 = vadd.f32 %v187, %v188
    %v190 = vrot.slane %v189, 2
    %v191 = vadd.f32 %v189, %v190
    %v192 = vrot.slane %v191, 1
    %v193 = vadd.f32 %v191, %v192
    %v194 = vrcp.pop %v193
    %v195 = vmul.f32 %v66, %v187
    %v196 = vsel %vm146, %v195, 0.0
    %v197 = vrot.slane %v196, 4
    %v198 = vadd.f32 %v196, %v197
    %v199 = vrot.slane %v198, 2
    %v200 = vadd.f32 %v198, %v199
    %v201 = vrot.slane %v200, 1
    %v202 = vadd.f32 %v200, %v201
    %v203 = vmul.f32 %v202, %v194
    %206 = vrot.lane.b32.xlu0 %v203, 32
    %v207 = vpop.permute.xlu0 %206
    %v209 = vsel %vm146, %v145, %v207
    %v211 = vsel %vm81, %v209, 0
    %213 = vmatpush.msra.mxu0 0.0
    %214 = vmatpush.msra.mxu0 0.0
    %215 = vmatpush.msra.mxu0 0.0
    %216 = vmatpush.msra.mxu0 0.0
    %217 = vmatpush.msra.mxu0 0.0
    %218 = vmatpush.msra.mxu0 0.0
    %219 = vmatpush.msra.mxu0 0.0
    %220 = vmatpush.msra.mxu0 0.0
    %221 = vmatpush.msra.mxu0 %v74
    %222 = vmatpush.msra.mxu0 %v73
    %223 = vmatpush.msra.mxu0 %v72
    %224 = vmatpush.msra.mxu0 %v71
    %225 = vmatpush.msra.mxu0 %v70
    %226 = vmatpush.msra.mxu0 %v69
    %227 = vmatpush.msra.mxu0 %v68
    %228 = vmatpush.msra.mxu0 %v67
    %229 = vmatmul.f32.gmra.mxu0 %v211
    %v230 = vpop.f32.mrf.mxu0
    %v231 = vadd.f32 %v75, %v230
    %232 = vdwg.mxu0
    %v233 = vxor.u32 %v231, 2147483648
    %v234 = vmul.f32 %v233, 1.442695
    %v235 = vpow.pop %v234
    %v236 = vadd.f32 %v235, 1.0
    %v237 = vrcp.pop %v236
    %v238 = vmul.f32 %v236, %v237
    %v239 = vsub.f32 1.0, %v238
    %v240 = vmul.f32 %v237, %v239
    %v241 = vadd.f32 %v237, %v240
    %vm242 = vweird.f32 %v236
    %vm243 = vweird.f32 %v237
    %vm244 = vmor %vm242, %vm243
    %v245 = vsel %vm244, %v237, %v241
    %v246 = vand.u32 2147483647, %v236
    %vm247 = vcmp.eq.f32.partialorder %v246, 8.507059e+37
    %v248 = vand.u32 %v236, 2147483648
    %v249 = vor.u32 1.1754944e-38, %v248
    %v250 = vsel %vm247, %v249, %v245
    %v251 = vmul.f32 1.0, %v250
    %v252 = vmul.f32 %v251, 2.0
    %v253 = vsub.f32 %v252, 1.0
    %v254 = vmul.f32 %v251, %v136
    %256 = vrot.lane.b32.xlu0 %v253, 64
    %v257 = vpop.permute.xlu0 %256
    %v259 = vmul.f32 %v251, %v257
    %261 = vrot.lane.b32.xlu0 %v259, 96
    %v262 = vpop.permute.xlu0 %261
    %v264 = vadd.f32 %v254, %v262
    %v265 = vtanh.pop %v264
    %267 = vrot.lane.b32.xlu0 %v265, 64
    %v268 = vpop.permute.xlu0 %267
    %v270 = vmul.f32 %v251, %v268
    %272 = vrot.lane.b32.xlu0 %v270, 64
    %v273 = vpop.permute.xlu0 %272
    %v274 = vsel %vm146, %v273, 0
    %276 = vmatpush.msra.mxu0 0.0
    %277 = vmatpush.msra.mxu0 0.0
    %278 = vmatpush.msra.mxu0 0.0
    %279 = vmatpush.msra.mxu0 0.0
    %280 = vmatpush.msra.mxu0 0.0
    %281 = vmatpush.msra.mxu0 0.0
    %282 = vmatpush.msra.mxu0 0.0
    %283 = vmatpush.msra.mxu0 0.0
    %284 = vmatpush.msra.mxu0 0.0
    %285 = vmatpush.msra.mxu0 0.0
    %286 = vmatpush.msra.mxu0 0.0
    %287 = vmatpush.msra.mxu0 0.0
    %288 = vmatpush.msra.mxu0 %v79
    %289 = vmatpush.msra.mxu0 %v78
    %290 = vmatpush.msra.mxu0 %v77
    %291 = vmatpush.msra.mxu0 %v76
    %292 = vmatmul.f32.gmra.mxu0 %v274
    %v293 = vpop.f32.mrf.mxu0
    %v294 = vadd.f32 0.0, %v293
    %295 = vdwg.mxu0
    %v296 = vperm.slane %v294, 0
    %v297 = vadd.f32 %v296, %v66
    %v298 = vtanh.pop %v297
    %v299 = vmul.f32 %v298, %v173
    %v300 = vsel %vm146, %v299, 0.0
    %301 = vadd.xlane.f32.xlu0 %v300
    %v302 = vpop.xlane.xlu0 %301
    %v303 = vrot.slane %v302, 4
    %v304 = vmax.f32 %v302, %v303
    %v305 = vrot.slane %v304, 2
    %v306 = vmax.f32 %v304, %v305
    %v307 = vrot.slane %v306, 1
    %v308 = vmax.f32 %v306, %v307
    %v309 = vsub.f32 %v302, %v308
    %v310 = vmul.f32 %v309, 1.442695
    %v311 = vpow.pop %v310
    %v312 = vrot.slane %v311, 4
    %v313 = vadd.f32 %v311, %v312
    %v314 = vrot.slane %v313, 2
    %v315 = vadd.f32 %v313, %v314
    %v316 = vrot.slane %v315, 1
    %v317 = vadd.f32 %v315, %v316
    %v318 = vrcp.pop %v317
    %v319 = vmul.f32 %v66, %v311
    %v320 = vsel %vm146, %v319, 0.0
    %v321 = vrot.slane %v320, 4
    %v322 = vadd.f32 %v320, %v321
    %v323 = vrot.slane %v322, 2
    %v324 = vadd.f32 %v322, %v323
    %v325 = vrot.slane %v324, 1
    %v326 = vadd.f32 %v324, %v325
    %v327 = vmul.f32 %v326, %v318
    %330 = vrot.lane.b32.xlu0 %v327, 32
    %v331 = vpop.permute.xlu0 %330
    %v333 = vsel %vm146, %v273, %v331
    %v335 = vsel %vm81, %v333, 0
    %337 = vmatpush.msra.mxu0 0.0
    %338 = vmatpush.msra.mxu0 0.0
    %339 = vmatpush.msra.mxu0 0.0
    %340 = vmatpush.msra.mxu0 0.0
    %341 = vmatpush.msra.mxu0 0.0
    %342 = vmatpush.msra.mxu0 0.0
    %343 = vmatpush.msra.mxu0 0.0
    %344 = vmatpush.msra.mxu0 0.0
    %345 = vmatpush.msra.mxu0 %v74
    %346 = vmatpush.msra.mxu0 %v73
    %347 = vmatpush.msra.mxu0 %v72
    %348 = vmatpush.msra.mxu0 %v71
    %349 = vmatpush.msra.mxu0 %v70
    %350 = vmatpush.msra.mxu0 %v69
    %351 = vmatpush.msra.mxu0 %v68
    %352 = vmatpush.msra.mxu0 %v67
    %353 = vmatmul.f32.gmra.mxu0 %v335
    %v354 = vpop.f32.mrf.mxu0
    %v355 = vadd.f32 %v75, %v354
    %356 = vdwg.mxu0
    %v357 = vxor.u32 %v355, 2147483648
    %v358 = vmul.f32 %v357, 1.442695
    %v359 = vpow.pop %v358
    %v360 = vadd.f32 %v359, 1.0
    %v361 = vrcp.pop %v360
    %v362 = vmul.f32 %v360, %v361
    %v363 = vsub.f32 1.0, %v362
    %v364 = vmul.f32 %v361, %v363
    %v365 = vadd.f32 %v361, %v364
    %vm366 = vweird.f32 %v360
    %vm367 = vweird.f32 %v361
    %vm368 = vmor %vm366, %vm367
    %v369 = vsel %vm368, %v361, %v365
    %v370 = vand.u32 2147483647, %v360
    %vm371 = vcmp.eq.f32.partialorder %v370, 8.507059e+37
    %v372 = vand.u32 %v360, 2147483648
    %v373 = vor.u32 1.1754944e-38, %v372
    %v374 = vsel %vm371, %v373, %v369
    %v375 = vmul.f32 1.0, %v374
    %v376 = vmul.f32 %v375, 2.0
    %v377 = vsub.f32 %v376, 1.0
    %v378 = vmul.f32 %v375, %v264
    %380 = vrot.lane.b32.xlu0 %v377, 64
    %v381 = vpop.permute.xlu0 %380
    %v383 = vmul.f32 %v375, %v381
    %385 = vrot.lane.b32.xlu0 %v383, 96
    %v386 = vpop.permute.xlu0 %385
    %v388 = vadd.f32 %v378, %v386
    %v389 = vtanh.pop %v388
    %391 = vrot.lane.b32.xlu0 %v389, 64
    %v392 = vpop.permute.xlu0 %391
    %v394 = vmul.f32 %v375, %v392
    %396 = vrot.lane.b32.xlu0 %v394, 64
    %v397 = vpop.permute.xlu0 %396
    %v398 = vsel %vm146, %v397, 0
    %400 = vmatpush.msra.mxu0 0.0
    %401 = vmatpush.msra.mxu0 0.0
    %402 = vmatpush.msra.mxu0 0.0
    %403 = vmatpush.msra.mxu0 0.0
    %404 = vmatpush.msra.mxu0 0.0
    %405 = vmatpush.msra.mxu0 0.0
    %406 = vmatpush.msra.mxu0 0.0
    %407 = vmatpush.msra.mxu0 0.0
    %408 = vmatpush.msra.mxu0 0.0
    %409 = vmatpush.msra.mxu0 0.0
    %410 = vmatpush.msra.mxu0 0.0
    %411 = vmatpush.msra.mxu0 0.0
    %412 = vmatpush.msra.mxu0 %v79
    %413 = vmatpush.msra.mxu0 %v78
    %414 = vmatpush.msra.mxu0 %v77
    %415 = vmatpush.msra.mxu0 %v76
    %416 = vmatmul.f32.gmra.mxu0 %v398
    %v417 = vpop.f32.mrf.mxu0
    %v418 = vadd.f32 0.0, %v417
    %419 = vdwg.mxu0
    %v420 = vperm.slane %v418, 0
    %v421 = vadd.f32 %v420, %v66
    %v422 = vtanh.pop %v421
    %v423 = vmul.f32 %v422, %v173
    %v424 = vsel %vm146, %v423, 0.0
    %425 = vadd.xlane.f32.xlu0 %v424
    %v426 = vpop.xlane.xlu0 %425
    %v427 = vrot.slane %v426, 4
    %v428 = vmax.f32 %v426, %v427
    %v429 = vrot.slane %v428, 2
    %v430 = vmax.f32 %v428, %v429
    %v431 = vrot.slane %v430, 1
    %v432 = vmax.f32 %v430, %v431
    %v433 = vsub.f32 %v426, %v432
    %v434 = vmul.f32 %v433, 1.442695
    %v435 = vpow.pop %v434
    %v436 = vrot.slane %v435, 4
    %v437 = vadd.f32 %v435, %v436
    %v438 = vrot.slane %v437, 2
    %v439 = vadd.f32 %v437, %v438
    %v440 = vrot.slane %v439, 1
    %v441 = vadd.f32 %v439, %v440
    %v442 = vrcp.pop %v441
    %v443 = vmul.f32 %v66, %v435
    %v444 = vsel %vm146, %v443, 0.0
    %v445 = vrot.slane %v444, 4
    %v446 = vadd.f32 %v444, %v445
    %v447 = vrot.slane %v446, 2
    %v448 = vadd.f32 %v446, %v447
    %v449 = vrot.slane %v448, 1
    %v450 = vadd.f32 %v448, %v449
    %v451 = vmul.f32 %v450, %v442
    %454 = vrot.lane.b32.xlu0 %v451, 32
    %v455 = vpop.permute.xlu0 %454
    %v457 = vsel %vm146, %v397, %v455
    %v459 = vsel %vm81, %v457, 0
    %461 = vmatpush.msra.mxu0 0.0
    %462 = vmatpush.msra.mxu0 0.0
    %463 = vmatpush.msra.mxu0 0.0
    %464 = vmatpush.msra.mxu0 0.0
    %465 = vmatpush.msra.mxu0 0.0
    %466 = vmatpush.msra.mxu0 0.0
    %467 = vmatpush.msra.mxu0 0.0
    %468 = vmatpush.msra.mxu0 0.0
    %469 = vmatpush.msra.mxu0 %v74
    %470 = vmatpush.msra.mxu0 %v73
    %471 = vmatpush.msra.mxu0 %v72
    %472 = vmatpush.msra.mxu0 %v71
    %473 = vmatpush.msra.mxu0 %v70
    %474 = vmatpush.msra.mxu0 %v69
    %475 = vmatpush.msra.mxu0 %v68
    %476 = vmatpush.msra.mxu0 %v67
    %477 = vmatmul.f32.gmra.mxu0 %v459
    %v478 = vpop.f32.mrf.mxu0
    %v479 = vadd.f32 %v75, %v478
    %480 = vdwg.mxu0
    %v481 = vxor.u32 %v479, 2147483648
    %v482 = vmul.f32 %v481, 1.442695
    %v483 = vpow.pop %v482
    %v484 = vadd.f32 %v483, 1.0
    %v485 = vrcp.pop %v484
    %v486 = vmul.f32 %v484, %v485
    %v487 = vsub.f32 1.0, %v486
    %v488 = vmul.f32 %v485, %v487
    %v489 = vadd.f32 %v485, %v488
    %vm490 = vweird.f32 %v484
    %vm491 = vweird.f32 %v485
    %vm492 = vmor %vm490, %vm491
    %v493 = vsel %vm492, %v485, %v489
    %v494 = vand.u32 2147483647, %v484
    %vm495 = vcmp.eq.f32.partialorder %v494, 8.507059e+37
    %v496 = vand.u32 %v484, 2147483648
    %v497 = vor.u32 1.1754944e-38, %v496
    %v498 = vsel %vm495, %v497, %v493
    %v499 = vmul.f32 1.0, %v498
    %v500 = vmul.f32 %v499, 2.0
    %v501 = vsub.f32 %v500, 1.0
    %v502 = vmul.f32 %v499, %v388
    %504 = vrot.lane.b32.xlu0 %v501, 64
    %v505 = vpop.permute.xlu0 %504
    %v507 = vmul.f32 %v499, %v505
    %509 = vrot.lane.b32.xlu0 %v507, 96
    %v510 = vpop.permute.xlu0 %509
    %v512 = vadd.f32 %v502, %v510
    %v513 = vtanh.pop %v512
    %515 = vrot.lane.b32.xlu0 %v513, 64
    %v516 = vpop.permute.xlu0 %515
    %v518 = vmul.f32 %v499, %v516
    %520 = vrot.lane.b32.xlu0 %v518, 64
    %v521 = vpop.permute.xlu0 %520
    %v522 = vsel %vm146, %v521, 0
    %524 = vmatpush.msra.mxu0 0.0
    %525 = vmatpush.msra.mxu0 0.0
    %526 = vmatpush.msra.mxu0 0.0
    %527 = vmatpush.msra.mxu0 0.0
    %528 = vmatpush.msra.mxu0 0.0
    %529 = vmatpush.msra.mxu0 0.0
    %530 = vmatpush.msra.mxu0 0.0
    %531 = vmatpush.msra.mxu0 0.0
    %532 = vmatpush.msra.mxu0 0.0
    %533 = vmatpush.msra.mxu0 0.0
    %534 = vmatpush.msra.mxu0 0.0
    %535 = vmatpush.msra.mxu0 0.0
    %536 = vmatpush.msra.mxu0 %v79
    %537 = vmatpush.msra.mxu0 %v78
    %538 = vmatpush.msra.mxu0 %v77
    %539 = vmatpush.msra.mxu0 %v76
    %540 = vmatmul.f32.gmra.mxu0 %v522
    %v541 = vpop.f32.mrf.mxu0
    %v542 = vadd.f32 0.0, %v541
    %543 = vdwg.mxu0
    %v544 = vperm.slane %v542, 0
    %v545 = vadd.f32 %v544, %v66
    %v546 = vtanh.pop %v545
    %v547 = vmul.f32 %v546, %v173
    %v548 = vsel %vm146, %v547, 0.0
    %549 = vadd.xlane.f32.xlu0 %v548
    %v550 = vpop.xlane.xlu0 %549
    %v551 = vrot.slane %v550, 4
    %v552 = vmax.f32 %v550, %v551
    %v553 = vrot.slane %v552, 2
    %v554 = vmax.f32 %v552, %v553
    %v555 = vrot.slane %v554, 1
    %v556 = vmax.f32 %v554, %v555
    %v557 = vsub.f32 %v550, %v556
    %v558 = vmul.f32 %v557, 1.442695
    %v559 = vpow.pop %v558
    %v560 = vrot.slane %v559, 4
    %v561 = vadd.f32 %v559, %v560
    %v562 = vrot.slane %v561, 2
    %v563 = vadd.f32 %v561, %v562
    %v564 = vrot.slane %v563, 1
    %v565 = vadd.f32 %v563, %v564
    %v566 = vrcp.pop %v565
    %v567 = vmul.f32 %v66, %v559
    %v568 = vsel %vm146, %v567, 0.0
    %v569 = vrot.slane %v568, 4
    %v570 = vadd.f32 %v568, %v569
    %v571 = vrot.slane %v570, 2
    %v572 = vadd.f32 %v570, %v571
    %v573 = vrot.slane %v572, 1
    %v574 = vadd.f32 %v572, %v573
    %v575 = vmul.f32 %v574, %v566
    %578 = vrot.lane.b32.xlu0 %v575, 32
    %v579 = vpop.permute.xlu0 %578
    %v581 = vsel %vm146, %v521, %v579
    %vm582 = vcmask 516096
    %583 = vst.msk [vmem:[#allocation8] sm:$0x1] %vm582, %v581
    // Predicated region
    $region34: #{tpu_custom_call.1} parent=1 // pred_check
      _
    $region35: #{tpu_custom_call.1} parent=1 // pred_check_branch
      %585 = sbr.rel (0) target = $region37
    $region36: #{tpu_custom_call.1} parent=1 // pred_region
      %587 = vsyncadd [#allocation4], 0
      %s589 = sshll.u32 [#allocation8], 4
      %s590 = int_to_ptr.vmem [resolvable:$true] %s589
      %s591 = sshll.u32 %s5, 4
      %s592 = int_to_ptr.hbm [resolvable:$true] %s591
      %594 = dma.vmem_to_hbm [thread:$0]  %s590, 16, %s592, [#allocation4]
    $region37: #{tpu_custom_call.1} parent=1 // pred_fallthru
      _
    // Predicated region
    $region38: #{tpu_custom_call.1} parent=1 // pred_check
      _
    $region39: #{tpu_custom_call.1} parent=1 // pred_check_branch
      %596 = sbr.rel (0) target = $region41
    $region40: #{tpu_custom_call.1} parent=1 // pred_region
      %598 = dma.done [#allocation4], 16
    $region41: #{tpu_custom_call.1} parent=1 // pred_fallthru
      _
    %599 = vsyncpa [#allocation3], 1
    %600 = vsyncpa [#allocation6], 1
    %601 = vsyncpa [#allocation4], 1

</llo_original>
